<compile_context>
chip_gen: v7x
topology: tpu7x:2x2x1
jax: 0.10.0
libtpu: 0.0.40
codegen_flags: <defaults>
</compile_context>

<pallas_src>
import jax
import jax.numpy as jnp
from jax import lax
from jax.experimental import pallas as pl
from jax.experimental.pallas import tpu as pltpu


def add_conv1x1_kernel(a_ref, b_ref, w_ref, o_ref):
    # a_ref, b_ref: (1, C_in, HW)   w_ref: (tile_cout, C_in)   o_ref: (1, tile_cout, HW)
    x = a_ref[0] + b_ref[0]                       # elementwise add (VPU), (C_in, HW)
    # 1x1 conv == matmul on the MXU: contract C_in of W (dim 1) with C_in of x (dim 0).
    # Weight stays in its native (C_out, C_in) layout (weight-stationary RHS feed).
    o_ref[0] = lax.dot_general(
        w_ref[...], x,
        dimension_numbers=(((1,), (0,)), ((), ())),
        preferred_element_type=jnp.float32,
    ).astype(o_ref.dtype)


def add_conv1x1(x248, x234, weight, *, cout_tiles=2):
    """x248, x234: (N, C_in, H, W) float32.  weight: (C_out, C_in, 1, 1) float32."""
    N, C_in, H, W = x248.shape
    C_out = weight.shape[0]
    HW = H * W

    assert C_out % cout_tiles == 0, "C_out must divide evenly into tiles"
    tile_cout = C_out // cout_tiles
    assert tile_cout % 8 == 0, "C_out tile must be a multiple of 8 (sublanes)"

    # Free reshapes only -- data stays in its native NCHW memory layout.
    a = x248.reshape(N, C_in, HW)
    b = x234.reshape(N, C_in, HW)
    w = weight.reshape(C_out, C_in)          # no transpose

    out = pl.pallas_call(
        add_conv1x1_kernel,
        out_shape=jax.ShapeDtypeStruct((N, C_out, HW), jnp.float32),
        grid=(N, cout_tiles),
        in_specs=[
            pl.BlockSpec((1, C_in, HW), lambda n, j: (n, 0, 0)),
            pl.BlockSpec((1, C_in, HW), lambda n, j: (n, 0, 0)),
            pl.BlockSpec((tile_cout, C_in), lambda n, j: (j, 0)),
        ],
        out_specs=pl.BlockSpec((1, tile_cout, HW), lambda n, j: (n, j, 0)),
        compiler_params=pltpu.CompilerParams(
            dimension_semantics=("parallel", "parallel")),
    )(a, b, w)

    # Free reshape back to NCHW.
    return out.reshape(N, C_out, H, W)


if __name__ == "__main__":
    key = jax.random.PRNGKey(0)
    k1, k2, k3 = jax.random.split(key, 3)

    N, C_in, H, W = 1, 136, 14, 14
    C_out = 816

    x248 = jax.random.normal(k1, (N, C_in, H, W), dtype=jnp.float32)
    x234 = jax.random.normal(k2, (N, C_in, H, W), dtype=jnp.float32)
    # Deterministic Conv2d weight init (kaiming-uniform-like bound), no bias.
    bound = 1.0 / (C_in ** 0.5)
    weight = jax.random.uniform(k3, (C_out, C_in, 1, 1),
                                minval=-bound, maxval=bound, dtype=jnp.float32)

    out = jax.block_until_ready(add_conv1x1(x248, x234, weight))

    # Reference check in plain JAX (same math, layout-native).
    xs = (x248 + x234).reshape(N, C_in, H * W)
    ref = jnp.einsum('oc,ncm->nom', weight.reshape(C_out, C_in), xs,
                     precision=lax.Precision.HIGHEST).reshape(N, C_out, H, W)
    assert out.shape == (N, C_out, H, W)
    assert jnp.allclose(out, ref, atol=1e-4, rtol=1e-4)

    print("KERNEL_OK")
</pallas_src>

<mosaic_0001>
module attributes {stable_mosaic.version = 11 : i64} {
  func.func @add_conv1x1_kernel(%arg0: i32, %arg1: i32, %arg2: memref<1x136x196xf32, #tpu.memory_space<vmem>>, %arg3: memref<1x136x196xf32, #tpu.memory_space<vmem>>, %arg4: memref<408x136xf32, #tpu.memory_space<vmem>>, %arg5: memref<1x408x196xf32, #tpu.memory_space<vmem>>) attributes {dimension_semantics = [#tpu.dimension_semantics<parallel>, #tpu.dimension_semantics<parallel>], iteration_bounds = array<i64: 1, 2>, scalar_prefetch = 0 : i64, scratch_operands = 0 : i64, tpu.core_type = #tpu.core_type<tc>, window_params = [{transform_indices = @transform_0, window_bounds = array<i64: 1, 136, 196>}, {transform_indices = @transform_1, window_bounds = array<i64: 1, 136, 196>}, {transform_indices = @transform_2, window_bounds = array<i64: 408, 136>}, {transform_indices = @transform_3, window_bounds = array<i64: 1, 408, 196>}]} {
    %c0 = arith.constant 0 : index
    %c0_0 = arith.constant 0 : index
    %c0_1 = arith.constant 0 : index
    %0 = vector.load %arg2[%c0, %c0_0, %c0_1] : memref<1x136x196xf32, #tpu.memory_space<vmem>>, vector<1x136x196xf32>
    %1 = vector.shape_cast %0 : vector<1x136x196xf32> to vector<136x196xf32>
    %c0_2 = arith.constant 0 : index
    %c0_3 = arith.constant 0 : index
    %c0_4 = arith.constant 0 : index
    %2 = vector.load %arg3[%c0_2, %c0_3, %c0_4] : memref<1x136x196xf32, #tpu.memory_space<vmem>>, vector<1x136x196xf32>
    %3 = vector.shape_cast %2 : vector<1x136x196xf32> to vector<136x196xf32>
    %4 = arith.addf %1, %3 : vector<136x196xf32>
    %c0_5 = arith.constant 0 : index
    %c0_6 = arith.constant 0 : index
    %5 = vector.load %arg4[%c0_5, %c0_6] : memref<408x136xf32, #tpu.memory_space<vmem>>, vector<408x136xf32>
    %cst = arith.constant dense<0.000000e+00> : vector<408x196xf32>
    %6 = tpu.matmul %5, %4, %cst {dimension_numbers = #tpu.dot_dimension_numbers<[1], [0], [0], [1], [0, 0, 1, 1], [], []>} : vector<408x136xf32>, vector<136x196xf32>, vector<408x196xf32> -> vector<408x196xf32>
    %c0_7 = arith.constant 0 : index
    %c0_8 = arith.constant 0 : index
    %c0_9 = arith.constant 0 : index
    %7 = vector.load %arg5[%c0_7, %c0_8, %c0_9] : memref<1x408x196xf32, #tpu.memory_space<vmem>>, vector<1x408x196xf32>
    %8 = vector.shape_cast %7 : vector<1x408x196xf32> to vector<408x196xf32>
    %9 = vector.shape_cast %6 : vector<408x196xf32> to vector<1x408x196xf32>
    tpu.vector_store %arg5[%c0_7, %c0_8, %c0_9], %9 {strides = array<i32>} : memref<1x408x196xf32, #tpu.memory_space<vmem>>, vector<1x408x196xf32>,
    return
  }
  func.func @transform_0(%arg0: i32, %arg1: i32) -> (i32, i32, i32) {
    %c0_i32 = arith.constant 0 : i32
    %c0_i32_0 = arith.constant 0 : i32
    %c0_i32_1 = arith.constant 0 : i32
    return %arg0, %c0_i32, %c0_i32_0 : i32, i32, i32
  }
  func.func @transform_1(%arg0: i32, %arg1: i32) -> (i32, i32, i32) {
    %c0_i32 = arith.constant 0 : i32
    %c0_i32_0 = arith.constant 0 : i32
    %c0_i32_1 = arith.constant 0 : i32
    return %arg0, %c0_i32, %c0_i32_0 : i32, i32, i32
  }
  func.func @transform_2(%arg0: i32, %arg1: i32) -> (i32, i32) {
    %c0_i32 = arith.constant 0 : i32
    %c0_i32_0 = arith.constant 0 : i32
    return %arg1, %c0_i32 : i32, i32
  }
  func.func @transform_3(%arg0: i32, %arg1: i32) -> (i32, i32, i32) {
    %c0_i32 = arith.constant 0 : i32
    %c0_i32_0 = arith.constant 0 : i32
    return %arg0, %arg1, %c0_i32 : i32, i32, i32
  }
}

</mosaic_0001>

<llo_original>
// kernel: tpu_custom_call.1
$region0: #{tpu_custom_call.1}
  #allocation0 [shape = 'u32[]', space=smem, size = 0x4, offset = 0x4, fixed_abs, tag = 'smem constant byte address 0x4 - core index']
  #allocation1 [shape = 'u32[144,128]{1,0:T(1,128)}', space=vmem, size = 0x12000, scoped, tag = 'internal scratch']
  %s0 = inlined_call_operand.vmem [shape: f32[1,136,196], index: 0, kind: input, shape index: {}]
  %s1 = inlined_call_operand.vmem [shape: f32[1,136,196], index: 1, kind: input, shape index: {}]
  %s2 = inlined_call_operand.vmem [shape: f32[816,136], index: 2, kind: input, shape index: {}]
  %s3 = inlined_call_operand.vmem [shape: f32[1,816,196], index: 3, kind: output, shape index: {}]
  %s4 = sld [smem:[#allocation0]]
  $region45: #{tpu_custom_call.1} parent=0
    _
  %s6 = ssub.s32 1, %s4
  %s7 = scalar_select 0, %s6, %s4
  loop: start=0, step=1, limit=4
  $region2: #{tpu_custom_call.1} parent=0 // loop_pre_header
    _
  $region3: #{tpu_custom_call.1} parent=0 // loop_header
    %s9 = sphi 0, %s13
    %p10 = scmp.ge.s32.totalorder %s9, 4
    %s16 = sphi 0, %s28
    %s17 = sphi 0, %s24
    %s18 = sphi 0, %s16
    %s19 = sphi 0, %s17
    %s20 = sphi 0, %s18
    %s21 = sphi 0, %s19
    %s31 = sphi 0, %s33
    %s34 = sphi 0, %s31
    %s35 = sphi 0, %s34
    %s51 = sphi 0, %s35
    %s57 = sphi 0, %s59
    %s60 = sphi 0, %s57
    %s61 = sphi 0, %s60
    %s77 = sphi 0, %s61
    %s83 = sphi 0, %s85
    %s86 = sphi 0, %s83
    %s87 = sphi 0, %s86
    %s103 = sphi 0, %s87
    %s111 = sphi 0, %s113
    %s114 = sphi 0, %s111
    %s115 = sphi 0, %s114
    %s131 = sphi 0, %s115
  $region4: #{tpu_custom_call.1} parent=0 // loop_header_branch
    %12 = sbr.rel (%p10) target = $region8
  $region5: #{tpu_custom_call.1} parent=0 // loop_body
    %s14 = ssub.s32 %s9, 1
    %s15 = ssub.s32 %s9, 2
    %s22 = sadd.s32 1, %s17
    %p23 = scmp.ge.s32.totalorder %s22, 2
    %s24 = scalar_select %p23, 0, %s22
    %s25 = sadd.s32 1, %s16
    %s26 = scalar_select %p23, %s25, %s16
    %p27 = scmp.ge.s32.totalorder %s26, 1
    %s28 = scalar_select %p27, 0, %s26
    %s29 = ssub.s32 %s16, %s28
    %p30 = scmp.eq.s32.totalorder %s29, 0
    %s32 = sadd.s32 %s31, 1
    %s33 = scalar_select %p30, %s31, %s32
    %p36 = pneg %p30
    %p37 = scmp.eq.s32.totalorder %s9, 1
    %p38 = por %p36, %p37
    %p39 = scmp.ne.s32.totalorder %s31, %s34
    %p40 = scmp.eq.s32.totalorder %s9, 0
    %p41 = por %p39, %p40
    %p42 = scmp.ne.s32.totalorder %s31, %s34
    %p43 = scmp.eq.s32.totalorder %s14, 1
    %p44 = por %p42, %p43
    %p45 = scmp.ne.s32.totalorder %s34, %s35
    %p46 = scmp.eq.s32.totalorder %s14, 0
    %p47 = por %p45, %p46
    %p48 = scmp.ne.s32.totalorder %s34, %s35
    %p49 = scmp.eq.s32.totalorder %s15, 1
    %p50 = por %p48, %p49
    %p52 = scmp.ne.s32.totalorder %s35, %s51
    %p53 = scmp.eq.s32.totalorder %s15, 0
    %p54 = por %p52, %p53
    %s55 = ssub.s32 %s16, %s28
    %p56 = scmp.eq.s32.totalorder %s55, 0
    %s58 = sadd.s32 %s57, 1
    %s59 = scalar_select %p56, %s57, %s58
    %p62 = pneg %p56
    %p63 = scmp.eq.s32.totalorder %s9, 1
    %p64 = por %p62, %p63
    %p65 = scmp.ne.s32.totalorder %s57, %s60
    %p66 = scmp.eq.s32.totalorder %s9, 0
    %p67 = por %p65, %p66
    %p68 = scmp.ne.s32.totalorder %s57, %s60
    %p69 = scmp.eq.s32.totalorder %s14, 1
    %p70 = por %p68, %p69
    %p71 = scmp.ne.s32.totalorder %s60, %s61
    %p72 = scmp.eq.s32.totalorder %s14, 0
    %p73 = por %p71, %p72
    %p74 = scmp.ne.s32.totalorder %s60, %s61
    %p75 = scmp.eq.s32.totalorder %s15, 1
    %p76 = por %p74, %p75
    %p78 = scmp.ne.s32.totalorder %s61, %s77
    %p79 = scmp.eq.s32.totalorder %s15, 0
    %p80 = por %p78, %p79
    %s81 = ssub.s32 %s17, %s24
    %p82 = scmp.eq.s32.totalorder %s81, 0
    %s84 = sadd.s32 %s83, 1
    %s85 = scalar_select %p82, %s83, %s84
    %p88 = pneg %p82
    %p89 = scmp.eq.s32.totalorder %s9, 1
    %p90 = por %p88, %p89
    %p91 = scmp.ne.s32.totalorder %s83, %s86
    %p92 = scmp.eq.s32.totalorder %s9, 0
    %p93 = por %p91, %p92
    %p94 = scmp.ne.s32.totalorder %s83, %s86
    %p95 = scmp.eq.s32.totalorder %s14, 1
    %p96 = por %p94, %p95
    %p97 = scmp.ne.s32.totalorder %s86, %s87
    %p98 = scmp.eq.s32.totalorder %s14, 0
    %p99 = por %p97, %p98
    %p100 = scmp.ne.s32.totalorder %s86, %s87
    %p101 = scmp.eq.s32.totalorder %s15, 1
    %p102 = por %p100, %p101
    %p104 = scmp.ne.s32.totalorder %s87, %s103
    %p105 = scmp.eq.s32.totalorder %s15, 0
    %p106 = por %p104, %p105
    %s107 = ssub.s32 %s16, %s28
    %s108 = ssub.s32 %s17, %s24
    %s109 = sor.u32 %s107, %s108
    %p110 = scmp.eq.s32.totalorder %s109, 0
    %s112 = sadd.s32 %s111, 1
    %s113 = scalar_select %p110, %s111, %s112
    %p116 = pneg %p110
    %p117 = scmp.eq.s32.totalorder %s9, 1
    %p118 = por %p116, %p117
    %p119 = scmp.ne.s32.totalorder %s111, %s114
    %p120 = scmp.eq.s32.totalorder %s9, 0
    %p121 = por %p119, %p120
    %p122 = scmp.ne.s32.totalorder %s111, %s114
    %p123 = scmp.eq.s32.totalorder %s14, 1
    %p124 = por %p122, %p123
    %p125 = scmp.ne.s32.totalorder %s114, %s115
    %p126 = scmp.eq.s32.totalorder %s14, 0
    %p127 = por %p125, %p126
    %p128 = scmp.ne.s32.totalorder %s114, %s115
    %p129 = scmp.eq.s32.totalorder %s15, 1
    %p130 = por %p128, %p129
    %p132 = scmp.ne.s32.totalorder %s115, %s131
    %p133 = scmp.eq.s32.totalorder %s15, 0
    %p134 = por %p132, %p133
    %p135 = scmp.le.s32.totalorder 1, %s9
    %p136 = scmp.lt.s32.totalorder %s9, 3
    %p137 = pnand %p135, %p136
    %p138 = pneg %p137
    // Predicated region
    $region9: #{tpu_custom_call.1} parent=5 // pred_check
      _
    $region10: #{tpu_custom_call.1} parent=5 // pred_check_branch
      %140 = sbr.rel (%p137) target = $region12
    $region11: #{tpu_custom_call.1} parent=5 // pred_region
      %s141 = ssub.s32 %s9, 1
      // Predicated region
      $region13: #{tpu_custom_call.1} parent=11 // pred_check
        %p142 = pneg %p47
      $region14: #{tpu_custom_call.1} parent=11 // pred_check_branch
        %144 = sbr.rel (%p142) target = $region16
      $region15: #{tpu_custom_call.1} parent=11 // pred_region
        %p145 = scmp.lt.s32.totalorder %s18, 0
        %s146 = scalar_select %p145, %s18, 0
        %s147 = smul.addr %s146, 34
        %s148 = smul.addr %s147, 8
        %s149 = scalar_lea.vmem %s0, %s148
      $region16: #{tpu_custom_call.1} parent=11 // pred_fallthru
        _
      // Predicated region
      $region17: #{tpu_custom_call.1} parent=11 // pred_check
        %p150 = pneg %p73
      $region18: #{tpu_custom_call.1} parent=11 // pred_check_branch
        %152 = sbr.rel (%p150) target = $region20
      $region19: #{tpu_custom_call.1} parent=11 // pred_region
        %p153 = scmp.lt.s32.totalorder %s18, 0
        %s154 = scalar_select %p153, %s18, 0
        %s155 = smul.addr %s154, 34
        %s156 = smul.addr %s155, 8
        %s157 = scalar_lea.vmem %s1, %s156
      $region20: #{tpu_custom_call.1} parent=11 // pred_fallthru
        _
    $region12: #{tpu_custom_call.1} parent=5 // pred_fallthru
      _
    %p158 = scmp.lt.s32.totalorder %s9, 2
    // Predicated region
    $region21: #{tpu_custom_call.1} parent=5 // pred_check
      %p159 = pneg %p158
    $region22: #{tpu_custom_call.1} parent=5 // pred_check_branch
      %161 = sbr.rel (%p159) target = $region24
    $region23: #{tpu_custom_call.1} parent=5 // pred_region
      // Predicated region
      $region25: #{tpu_custom_call.1} parent=23 // pred_check
        %p162 = pneg %p93
      $region26: #{tpu_custom_call.1} parent=23 // pred_check_branch
        %164 = sbr.rel (%p162) target = $region28
      $region27: #{tpu_custom_call.1} parent=23 // pred_region
        %s165 = smul.u32 51, %s17
        %p166 = scmp.lt.s32.totalorder %s165, 101
        %s167 = scalar_select %p166, %s165, 101
        %s168 = smul.addr %s167, 2
        %s169 = smul.addr %s168, 8
        %s170 = scalar_lea.vmem %s2, %s169
        %s171 = smul.u32 51, %s17
      $region28: #{tpu_custom_call.1} parent=23 // pred_fallthru
        _
    $region24: #{tpu_custom_call.1} parent=5 // pred_fallthru
      _
    %p172 = scmp.le.s32.totalorder 1, %s9
    %p173 = scmp.lt.s32.totalorder %s9, 3
    %p174 = pnand %p172, %p173
    %p175 = pneg %p174
    // Predicated region
    $region29: #{tpu_custom_call.1} parent=5 // pred_check
      _
    $region30: #{tpu_custom_call.1} parent=5 // pred_check_branch
      %177 = sbr.rel (%p174) target = $region32
    $region31: #{tpu_custom_call.1} parent=5 // pred_region
      %s178 = ssub.s32 %s9, 1
      %p179 = scmp.lt.s32.totalorder %s18, 0
      %s180 = scalar_select %p179, %s18, 0
      %s181 = smul.addr %s180, 34
      %s182 = smul.addr %s181, 8
      %s183 = scalar_lea.vmem %s0, %s182
      %p184 = pneg %p47
      %p185 = pneg %p44
      %p186 = scmp.lt.s32.totalorder %s18, 0
      %s187 = scalar_select %p186, %s18, 0
      %s188 = smul.addr %s187, 34
      %s189 = smul.addr %s188, 8
      %s190 = scalar_lea.vmem %s1, %s189
      %p191 = pneg %p73
      %p192 = pneg %p70
      %s193 = smul.u32 51, %s19
      %p194 = scmp.lt.s32.totalorder %s193, 101
      %s195 = scalar_select %p194, %s193, 101
      %s196 = smul.addr %s195, 2
      %s197 = smul.addr %s196, 8
      %s198 = scalar_lea.vmem %s2, %s197
      %p199 = pneg %p99
      %p200 = pneg %p96
      %p201 = pneg %p127
      %p202 = pneg %p124
      %s203 = smul.u32 51, %s19
      %p204 = scmp.lt.s32.totalorder %s18, 0
      %s205 = scalar_select %p204, %s18, 0
      %p206 = scmp.lt.s32.totalorder %s203, 101
      %s207 = scalar_select %p206, %s203, 101
      %s208 = smul.addr %s207, 2
      %s209 = smul.addr %s205, 204
      %s210 = sadd.s32 %s208, %s209
      %s211 = smul.addr %s210, 8
      %s212 = scalar_lea.vmem %s3, %s211
      %p213 = scmp.lt.s32.totalorder %s18, 0
      %s214 = scalar_select %p213, %s18, 0
      %s215 = smul.addr %s214, 34
      %s216 = smul.addr %s215, 8
      %s217 = scalar_lea.vmem %s0, %s216
      %p218 = scmp.lt.s32.totalorder %s18, 0
      %s219 = scalar_select %p218, %s18, 0
      %s220 = smul.addr %s219, 34
      %s221 = smul.addr %s220, 8
      %s222 = scalar_lea.vmem %s1, %s221
      %s223 = smul.u32 51, %s19
      %p224 = scmp.lt.s32.totalorder %s223, 101
      %s225 = scalar_select %p224, %s223, 101
      %s226 = smul.addr %s225, 2
      %s227 = smul.addr %s226, 8
      %s228 = scalar_lea.vmem %s2, %s227
      %s229 = smul.u32 51, %s19
      %s230 = smul.u32 51, %s19
      %p231 = scmp.lt.s32.totalorder %s18, 0
      %s232 = scalar_select %p231, %s18, 0
      %p233 = scmp.lt.s32.totalorder %s230, 101
      %s234 = scalar_select %p233, %s230, 101
      %s235 = smul.addr %s234, 2
      %s236 = smul.addr %s232, 204
      %s237 = sadd.s32 %s235, %s236
      %s238 = smul.addr %s237, 8
      %s239 = scalar_lea.vmem %s3, %s238
      %s240 = smul.u32 51, %s19
      %v241 = vld [vmem:[%s217] sm:$0xff]
      %v242 = vld [vmem:[%s217 + $0x8] sm:$0xff]
      %v243 = vld [vmem:[%s217 + $0x10] sm:$0xff]
      %v244 = vld [vmem:[%s217 + $0x18] sm:$0xff]
      %v245 = vld [vmem:[%s217 + $0x20] sm:$0xff]
      %v246 = vld [vmem:[%s217 + $0x28] sm:$0xff]
      %v247 = vld [vmem:[%s217 + $0x30] sm:$0xff]
      %v248 = vld [vmem:[%s217 + $0x38] sm:$0xff]
      %v249 = vld [vmem:[%s217 + $0x40] sm:$0xff]
      %v250 = vld [vmem:[%s217 + $0x48] sm:$0xff]
      %v251 = vld [vmem:[%s217 + $0x50] sm:$0xff]
      %v252 = vld [vmem:[%s217 + $0x58] sm:$0xff]
      %v253 = vld [vmem:[%s217 + $0x60] sm:$0xff]
      %v254 = vld [vmem:[%s217 + $0x68] sm:$0xff]
      %v255 = vld [vmem:[%s217 + $0x70] sm:$0xff]
      %v256 = vld [vmem:[%s217 + $0x78] sm:$0xff]
      %v257 = vld [vmem:[%s217 + $0x80] sm:$0xff]
      %v258 = vld [vmem:[%s217 + $0x88] sm:$0xff]
      %v259 = vld [vmem:[%s217 + $0x90] sm:$0xff]
      %v260 = vld [vmem:[%s217 + $0x98] sm:$0xff]
      %v261 = vld [vmem:[%s217 + $0xa0] sm:$0xff]
      %v262 = vld [vmem:[%s217 + $0xa8] sm:$0xff]
      %v263 = vld [vmem:[%s217 + $0xb0] sm:$0xff]
      %v264 = vld [vmem:[%s217 + $0xb8] sm:$0xff]
      %v265 = vld [vmem:[%s217 + $0xc0] sm:$0xff]
      %v266 = vld [vmem:[%s217 + $0xc8] sm:$0xff]
      %v267 = vld [vmem:[%s217 + $0xd0] sm:$0xff]
      %v268 = vld [vmem:[%s217 + $0xd8] sm:$0xff]
      %v269 = vld [vmem:[%s217 + $0xe0] sm:$0xff]
      %v270 = vld [vmem:[%s217 + $0xe8] sm:$0xff]
      %v271 = vld [vmem:[%s217 + $0xf0] sm:$0xff]
      %v272 = vld [vmem:[%s217 + $0xf8] sm:$0xff]
      %v273 = vld [vmem:[%s217 + $0x100] sm:$0xff]
      %v274 = vld [vmem:[%s217 + $0x108] sm:$0xff]
      %v275 = vld [vmem:[%s222] sm:$0xff]
      %v276 = vld [vmem:[%s222 + $0x8] sm:$0xff]
      %v277 = vld [vmem:[%s222 + $0x10] sm:$0xff]
      %v278 = vld [vmem:[%s222 + $0x18] sm:$0xff]
      %v279 = vld [vmem:[%s222 + $0x20] sm:$0xff]
      %v280 = vld [vmem:[%s222 + $0x28] sm:$0xff]
      %v281 = vld [vmem:[%s222 + $0x30] sm:$0xff]
      %v282 = vld [vmem:[%s222 + $0x38] sm:$0xff]
      %v283 = vld [vmem:[%s222 + $0x40] sm:$0xff]
      %v284 = vld [vmem:[%s222 + $0x48] sm:$0xff]
      %v285 = vld [vmem:[%s222 + $0x50] sm:$0xff]
      %v286 = vld [vmem:[%s222 + $0x58] sm:$0xff]
      %v287 = vld [vmem:[%s222 + $0x60] sm:$0xff]
      %v288 = vld [vmem:[%s222 + $0x68] sm:$0xff]
      %v289 = vld [vmem:[%s222 + $0x70] sm:$0xff]
      %v290 = vld [vmem:[%s222 + $0x78] sm:$0xff]
      %v291 = vld [vmem:[%s222 + $0x80] sm:$0xff]
      %v292 = vld [vmem:[%s222 + $0x88] sm:$0xff]
      %v293 = vld [vmem:[%s222 + $0x90] sm:$0xff]
      %v294 = vld [vmem:[%s222 + $0x98] sm:$0xff]
      %v295 = vld [vmem:[%s222 + $0xa0] sm:$0xff]
      %v296 = vld [vmem:[%s222 + $0xa8] sm:$0xff]
      %v297 = vld [vmem:[%s222 + $0xb0] sm:$0xff]
      %v298 = vld [vmem:[%s222 + $0xb8] sm:$0xff]
      %v299 = vld [vmem:[%s222 + $0xc0] sm:$0xff]
      %v300 = vld [vmem:[%s222 + $0xc8] sm:$0xff]
      %v301 = vld [vmem:[%s222 + $0xd0] sm:$0xff]
      %v302 = vld [vmem:[%s222 + $0xd8] sm:$0xff]
      %v303 = vld [vmem:[%s222 + $0xe0] sm:$0xff]
      %v304 = vld [vmem:[%s222 + $0xe8] sm:$0xff]
      %v305 = vld [vmem:[%s222 + $0xf0] sm:$0xff]
      %v306 = vld [vmem:[%s222 + $0xf8] sm:$0xff]
      %v307 = vld [vmem:[%s222 + $0x100] sm:$0xff]
      %v308 = vld [vmem:[%s222 + $0x108] sm:$0xff]
      %v309 = vadd.f32 %v241, %v275
      %v310 = vadd.f32 %v242, %v276
      %v311 = vadd.f32 %v243, %v277
      %v312 = vadd.f32 %v244, %v278
      %v313 = vadd.f32 %v245, %v279
      %v314 = vadd.f32 %v246, %v280
      %v315 = vadd.f32 %v247, %v281
      %v316 = vadd.f32 %v248, %v282
      %v317 = vadd.f32 %v249, %v283
      %v318 = vadd.f32 %v250, %v284
      %v319 = vadd.f32 %v251, %v285
      %v320 = vadd.f32 %v252, %v286
      %v321 = vadd.f32 %v253, %v287
      %v322 = vadd.f32 %v254, %v288
      %v323 = vadd.f32 %v255, %v289
      %v324 = vadd.f32 %v256, %v290
      %v325 = vadd.f32 %v257, %v291
      %v326 = vadd.f32 %v258, %v292
      %v327 = vadd.f32 %v259, %v293
      %v328 = vadd.f32 %v260, %v294
      %v329 = vadd.f32 %v261, %v295
      %v330 = vadd.f32 %v262, %v296
      %v331 = vadd.f32 %v263, %v297
      %v332 = vadd.f32 %v264, %v298
      %v333 = vadd.f32 %v265, %v299
      %v334 = vadd.f32 %v266, %v300
      %v335 = vadd.f32 %v267, %v301
      %v336 = vadd.f32 %v268, %v302
      %v337 = vadd.f32 %v269, %v303
      %v338 = vadd.f32 %v270, %v304
      %v339 = vadd.f32 %v271, %v305
      %v340 = vadd.f32 %v272, %v306
      %v341 = vadd.f32 %v273, %v307
      %v342 = vadd.f32 %v274, %v308
      %v343 = vld [vmem:[%s228] sm:$0xff]
      %v344 = vld [vmem:[%s228 + $0x8] sm:$0xff]
      %v345 = vld [vmem:[%s228 + $0x10] sm:$0xff]
      %v346 = vld [vmem:[%s228 + $0x18] sm:$0xff]
      %v347 = vld [vmem:[%s228 + $0x20] sm:$0xff]
      %v348 = vld [vmem:[%s228 + $0x28] sm:$0xff]
      %v349 = vld [vmem:[%s228 + $0x30] sm:$0xff]
      %v350 = vld [vmem:[%s228 + $0x38] sm:$0xff]
      %v351 = vld [vmem:[%s228 + $0x40] sm:$0xff]
      %v352 = vld [vmem:[%s228 + $0x48] sm:$0xff]
      %v353 = vld [vmem:[%s228 + $0x50] sm:$0xff]
      %v354 = vld [vmem:[%s228 + $0x58] sm:$0xff]
      %v355 = vld [vmem:[%s228 + $0x60] sm:$0xff]
      %v356 = vld [vmem:[%s228 + $0x68] sm:$0xff]
      %v357 = vld [vmem:[%s228 + $0x70] sm:$0xff]
      %v358 = vld [vmem:[%s228 + $0x78] sm:$0xff]
      %v359 = vld [vmem:[%s228 + $0x80] sm:$0xff]
      %v360 = vld [vmem:[%s228 + $0x88] sm:$0xff]
      %v361 = vld [vmem:[%s228 + $0x90] sm:$0xff]
      %v362 = vld [vmem:[%s228 + $0x98] sm:$0xff]
      %v363 = vld [vmem:[%s228 + $0xa0] sm:$0xff]
      %v364 = vld [vmem:[%s228 + $0xa8] sm:$0xff]
      %v365 = vld [vmem:[%s228 + $0xb0] sm:$0xff]
      %v366 = vld [vmem:[%s228 + $0xb8] sm:$0xff]
      %v367 = vld [vmem:[%s228 + $0xc0] sm:$0xff]
      %v368 = vld [vmem:[%s228 + $0xc8] sm:$0xff]
      %v369 = vld [vmem:[%s228 + $0xd0] sm:$0xff]
      %v370 = vld [vmem:[%s228 + $0xd8] sm:$0xff]
      %v371 = vld [vmem:[%s228 + $0xe0] sm:$0xff]
      %v372 = vld [vmem:[%s228 + $0xe8] sm:$0xff]
      %v373 = vld [vmem:[%s228 + $0xf0] sm:$0xff]
      %v374 = vld [vmem:[%s228 + $0xf8] sm:$0xff]
      %v375 = vld [vmem:[%s228 + $0x100] sm:$0xff]
      %v376 = vld [vmem:[%s228 + $0x108] sm:$0xff]
      %v377 = vld [vmem:[%s228 + $0x110] sm:$0xff]
      %v378 = vld [vmem:[%s228 + $0x118] sm:$0xff]
      %v379 = vld [vmem:[%s228 + $0x120] sm:$0xff]
      %v380 = vld [vmem:[%s228 + $0x128] sm:$0xff]
      %v381 = vld [vmem:[%s228 + $0x130] sm:$0xff]
      %v382 = vld [vmem:[%s228 + $0x138] sm:$0xff]
      %v383 = vld [vmem:[%s228 + $0x140] sm:$0xff]
      %v384 = vld [vmem:[%s228 + $0x148] sm:$0xff]
      %v385 = vld [vmem:[%s228 + $0x150] sm:$0xff]
      %v386 = vld [vmem:[%s228 + $0x158] sm:$0xff]
      %v387 = vld [vmem:[%s228 + $0x160] sm:$0xff]
      %v388 = vld [vmem:[%s228 + $0x168] sm:$0xff]
      %v389 = vld [vmem:[%s228 + $0x170] sm:$0xff]
      %v390 = vld [vmem:[%s228 + $0x178] sm:$0xff]
      %v391 = vld [vmem:[%s228 + $0x180] sm:$0xff]
      %v392 = vld [vmem:[%s228 + $0x188] sm:$0xff]
      %v393 = vld [vmem:[%s228 + $0x190] sm:$0xff]
      %v394 = vld [vmem:[%s228 + $0x198] sm:$0xff]
      %v395 = vld [vmem:[%s228 + $0x1a0] sm:$0xff]
      %v396 = vld [vmem:[%s228 + $0x1a8] sm:$0xff]
      %v397 = vld [vmem:[%s228 + $0x1b0] sm:$0xff]
      %v398 = vld [vmem:[%s228 + $0x1b8] sm:$0xff]
      %v399 = vld [vmem:[%s228 + $0x1c0] sm:$0xff]
      %v400 = vld [vmem:[%s228 + $0x1c8] sm:$0xff]
      %v401 = vld [vmem:[%s228 + $0x1d0] sm:$0xff]
      %v402 = vld [vmem:[%s228 + $0x1d8] sm:$0xff]
      %v403 = vld [vmem:[%s228 + $0x1e0] sm:$0xff]
      %v404 = vld [vmem:[%s228 + $0x1e8] sm:$0xff]
      %v405 = vld [vmem:[%s228 + $0x1f0] sm:$0xff]
      %v406 = vld [vmem:[%s228 + $0x1f8] sm:$0xff]
      %v407 = vld [vmem:[%s228 + $0x200] sm:$0xff]
      %v408 = vld [vmem:[%s228 + $0x208] sm:$0xff]
      %v409 = vld [vmem:[%s228 + $0x210] sm:$0xff]
      %v410 = vld [vmem:[%s228 + $0x218] sm:$0xff]
      %v411 = vld [vmem:[%s228 + $0x220] sm:$0xff]
      %v412 = vld [vmem:[%s228 + $0x228] sm:$0xff]
      %v413 = vld [vmem:[%s228 + $0x230] sm:$0xff]
      %v414 = vld [vmem:[%s228 + $0x238] sm:$0xff]
      %v415 = vld [vmem:[%s228 + $0x240] sm:$0xff]
      %v416 = vld [vmem:[%s228 + $0x248] sm:$0xff]
      %v417 = vld [vmem:[%s228 + $0x250] sm:$0xff]
      %v418 = vld [vmem:[%s228 + $0x258] sm:$0xff]
      %v419 = vld [vmem:[%s228 + $0x260] sm:$0xff]
      %v420 = vld [vmem:[%s228 + $0x268] sm:$0xff]
      %v421 = vld [vmem:[%s228 + $0x270] sm:$0xff]
      %v422 = vld [vmem:[%s228 + $0x278] sm:$0xff]
      %v423 = vld [vmem:[%s228 + $0x280] sm:$0xff]
      %v424 = vld [vmem:[%s228 + $0x288] sm:$0xff]
      %v425 = vld [vmem:[%s228 + $0x290] sm:$0xff]
      %v426 = vld [vmem:[%s228 + $0x298] sm:$0xff]
      %v427 = vld [vmem:[%s228 + $0x2a0] sm:$0xff]
      %v428 = vld [vmem:[%s228 + $0x2a8] sm:$0xff]
      %v429 = vld [vmem:[%s228 + $0x2b0] sm:$0xff]
      %v430 = vld [vmem:[%s228 + $0x2b8] sm:$0xff]
      %v431 = vld [vmem:[%s228 + $0x2c0] sm:$0xff]
      %v432 = vld [vmem:[%s228 + $0x2c8] sm:$0xff]
      %v433 = vld [vmem:[%s228 + $0x2d0] sm:$0xff]
      %v434 = vld [vmem:[%s228 + $0x2d8] sm:$0xff]
      %v435 = vld [vmem:[%s228 + $0x2e0] sm:$0xff]
      %v436 = vld [vmem:[%s228 + $0x2e8] sm:$0xff]
      %v437 = vld [vmem:[%s228 + $0x2f0] sm:$0xff]
      %v438 = vld [vmem:[%s228 + $0x2f8] sm:$0xff]
      %v439 = vld [vmem:[%s228 + $0x300] sm:$0xff]
      %v440 = vld [vmem:[%s228 + $0x308] sm:$0xff]
      %v441 = vld [vmem:[%s228 + $0x310] sm:$0xff]
      %v442 = vld [vmem:[%s228 + $0x318] sm:$0xff]
      %v443 = vld [vmem:[%s228 + $0x320] sm:$0xff]
      %v444 = vld [vmem:[%s228 + $0x328] sm:$0xff]
      %vm445 = vcmask 64512
      %v447 = vsel %vm445, %v344, 0
      %v450 = vsel %vm445, %v346, 0
      %v453 = vsel %vm445, %v348, 0
      %v456 = vsel %vm445, %v350, 0
      %v459 = vsel %vm445, %v352, 0
      %v462 = vsel %vm445, %v354, 0
      %v465 = vsel %vm445, %v356, 0
      %v468 = vsel %vm445, %v358, 0
      %v471 = vsel %vm445, %v360, 0
      %v474 = vsel %vm445, %v362, 0
      %v477 = vsel %vm445, %v364, 0
      %v480 = vsel %vm445, %v366, 0
      %v483 = vsel %vm445, %v368, 0
      %v486 = vsel %vm445, %v370, 0
      %v489 = vsel %vm445, %v372, 0
      %v492 = vsel %vm445, %v374, 0
      %v495 = vsel %vm445, %v376, 0
      %v498 = vsel %vm445, %v378, 0
      %v501 = vsel %vm445, %v380, 0
      %v504 = vsel %vm445, %v382, 0
      %v507 = vsel %vm445, %v384, 0
      %v510 = vsel %vm445, %v386, 0
      %v513 = vsel %vm445, %v388, 0
      %v516 = vsel %vm445, %v390, 0
      %v519 = vsel %vm445, %v392, 0
      %v522 = vsel %vm445, %v394, 0
      %v525 = vsel %vm445, %v396, 0
      %v528 = vsel %vm445, %v398, 0
      %v531 = vsel %vm445, %v400, 0
      %v534 = vsel %vm445, %v402, 0
      %v537 = vsel %vm445, %v404, 0
      %v540 = vsel %vm445, %v406, 0
      %v543 = vsel %vm445, %v408, 0
      %v546 = vsel %vm445, %v410, 0
      %v549 = vsel %vm445, %v412, 0
      %v552 = vsel %vm445, %v414, 0
      %v555 = vsel %vm445, %v416, 0
      %v558 = vsel %vm445, %v418, 0
      %v561 = vsel %vm445, %v420, 0
      %v564 = vsel %vm445, %v422, 0
      %v567 = vsel %vm445, %v424, 0
      %v570 = vsel %vm445, %v426, 0
      %v573 = vsel %vm445, %v428, 0
      %v576 = vsel %vm445, %v430, 0
      %v579 = vsel %vm445, %v432, 0
      %v582 = vsel %vm445, %v434, 0
      %v585 = vsel %vm445, %v436, 0
      %v588 = vsel %vm445, %v438, 0
      %v591 = vsel %vm445, %v440, 0
      %v594 = vsel %vm445, %v442, 0
      %v597 = vsel %vm445, %v444, 0
      %599 = vmatprep.subr.mxu0 %v310
      %600 = vmatpush1.msra.mxu0 %v309
      %601 = vmatprep.subr.mxu0 %v312
      %602 = vmatpush1.msra.mxu0 %v311
      %603 = vmatprep.subr.mxu0 %v314
      %604 = vmatpush1.msra.mxu0 %v313
      %605 = vmatprep.subr.mxu0 %v316
      %606 = vmatpush1.msra.mxu0 %v315
      %607 = vmatprep.subr.mxu0 %v318
      %608 = vmatpush1.msra.mxu0 %v317
      %609 = vmatprep.subr.mxu0 %v320
      %610 = vmatpush1.msra.mxu0 %v319
      %611 = vmatprep.subr.mxu0 %v322
      %612 = vmatpush1.msra.mxu0 %v321
      %613 = vmatprep.subr.mxu0 %v324
      %614 = vmatpush1.msra.mxu0 %v323
      %615 = vmatprep.subr.mxu0 %v326
      %616 = vmatpush1.msra.mxu0 %v325
      %617 = vmatprep.subr.mxu0 %v328
      %618 = vmatpush1.msra.mxu0 %v327
      %619 = vmatprep.subr.mxu0 %v330
      %620 = vmatpush1.msra.mxu0 %v329
      %621 = vmatprep.subr.mxu0 %v332
      %622 = vmatpush1.msra.mxu0 %v331
      %623 = vmatprep.subr.mxu0 %v334
      %624 = vmatpush1.msra.mxu0 %v333
      %625 = vmatprep.subr.mxu0 %v336
      %626 = vmatpush1.msra.mxu0 %v335
      %627 = vmatprep.subr.mxu0 %v338
      %628 = vmatpush1.msra.mxu0 %v337
      %629 = vmatprep.subr.mxu0 %v340
      %630 = vmatpush1.msra.mxu0 %v339
      %631 = vmatprep.subr.mxu0 %v342
      %632 = vmatpush1.msra.mxu0 %v341
      %633 = vmatprep.subr.mxu0 0.0
      %634 = vmatpush1.msra.mxu0 0.0
      %635 = vmatprep.subr.mxu0 0.0
      %636 = vmatpush1.msra.mxu0 0.0
      %637 = vmatprep.subr.mxu0 0.0
      %638 = vmatpush1.msra.mxu0 0.0
      %639 = vmatprep.subr.mxu0 0.0
      %640 = vmatpush1.msra.mxu0 0.0
      %641 = vmatprep.subr.mxu0 0.0
      %642 = vmatpush1.msra.mxu0 0.0
      %643 = vmatprep.subr.mxu0 0.0
      %644 = vmatpush1.msra.mxu0 0.0
      %645 = vmatprep.subr.mxu0 0.0
      %646 = vmatpush1.msra.mxu0 0.0
      %647 = vmatprep.subr.mxu0 0.0
      %648 = vmatpush1.msra.mxu0 0.0
      %649 = vmatprep.subr.mxu0 0.0
      %650 = vmatpush1.msra.mxu0 0.0
      %651 = vmatprep.subr.mxu0 0.0
      %652 = vmatpush1.msra.mxu0 0.0
      %653 = vmatprep.subr.mxu0 0.0
      %654 = vmatpush1.msra.mxu0 0.0
      %655 = vmatprep.subr.mxu0 0.0
      %656 = vmatpush1.msra.mxu0 0.0
      %657 = vmatprep.subr.mxu0 0.0
      %658 = vmatpush1.msra.mxu0 0.0
      %659 = vmatprep.subr.mxu0 0.0
      %660 = vmatpush1.msra.mxu0 0.0
      %661 = vmatprep.subr.mxu0 0.0
      %662 = vmatpush1.msra.mxu0 0.0
      %663 = vmatprep.mubr.f32.mxu0 %v447
      %664 = vmatmul.mubr.f32.gmra.mrb[0].mxu0 %v343
      %v665 = vpop.f32.mrb[0].mxu0
      %v666 = vadd.f32 0.0, %v665
      %v667 = vpop.f32.mrb[0].mxu0
      %v668 = vadd.f32 0.0, %v667
      %669 = vmatprep.mubr.f32.mxu0 %v450
      %670 = vmatmul.mubr.f32.gmra.mrb[0].mxu0 %v345
      %v671 = vpop.f32.mrb[0].mxu0
      %v672 = vadd.f32 0.0, %v671
      %v673 = vpop.f32.mrb[0].mxu0
      %v674 = vadd.f32 0.0, %v673
      %675 = vmatprep.mubr.f32.mxu0 %v453
      %676 = vmatmul.mubr.f32.gmra.mrb[0].mxu0 %v347
      %v677 = vpop.f32.mrb[0].mxu0
      %v678 = vadd.f32 0.0, %v677
      %v679 = vpop.f32.mrb[0].mxu0
      %v680 = vadd.f32 0.0, %v679
      %681 = vmatprep.mubr.f32.mxu0 %v456
      %682 = vmatmul.mubr.f32.gmra.mrb[0].mxu0 %v349
      %v683 = vpop.f32.mrb[0].mxu0
      %v684 = vadd.f32 0.0, %v683
      %v685 = vpop.f32.mrb[0].mxu0
      %v686 = vadd.f32 0.0, %v685
      %687 = vmatprep.mubr.f32.mxu0 %v459
      %688 = vmatmul.mubr.f32.gmra.mrb[0].mxu0 %v351
      %v689 = vpop.f32.mrb[0].mxu0
      %v690 = vadd.f32 0.0, %v689
      %v691 = vpop.f32.mrb[0].mxu0
      %v692 = vadd.f32 0.0, %v691
      %693 = vmatprep.mubr.f32.mxu0 %v462
      %694 = vmatmul.mubr.f32.gmra.mrb[0].mxu0 %v353
      %v695 = vpop.f32.mrb[0].mxu0
      %v696 = vadd.f32 0.0, %v695
      %v697 = vpop.f32.mrb[0].mxu0
      %v698 = vadd.f32 0.0, %v697
      %699 = vmatprep.mubr.f32.mxu0 %v465
      %700 = vmatmul.mubr.f32.gmra.mrb[0].mxu0 %v355
      %v701 = vpop.f32.mrb[0].mxu0
      %v702 = vadd.f32 0.0, %v701
      %v703 = vpop.f32.mrb[0].mxu0
      %v704 = vadd.f32 0.0, %v703
      %705 = vmatprep.mubr.f32.mxu0 %v468
      %706 = vmatmul.mubr.f32.gmra.mrb[0].mxu0 %v357
      %v707 = vpop.f32.mrb[0].mxu0
      %v708 = vadd.f32 0.0, %v707
      %v709 = vpop.f32.mrb[0].mxu0
      %v710 = vadd.f32 0.0, %v709
      %711 = vmatprep.mubr.f32.mxu0 %v471
      %712 = vmatmul.mubr.f32.gmra.mrb[0].mxu0 %v359
      %v713 = vpop.f32.mrb[0].mxu0
      %v714 = vadd.f32 0.0, %v713
      %v715 = vpop.f32.mrb[0].mxu0
      %v716 = vadd.f32 0.0, %v715
      %717 = vmatprep.mubr.f32.mxu0 %v474
      %718 = vmatmul.mubr.f32.gmra.mrb[0].mxu0 %v361
      %v719 = vpop.f32.mrb[0].mxu0
      %v720 = vadd.f32 0.0, %v719
      %v721 = vpop.f32.mrb[0].mxu0
      %v722 = vadd.f32 0.0, %v721
      %723 = vmatprep.mubr.f32.mxu0 %v477
      %724 = vmatmul.mubr.f32.gmra.mrb[0].mxu0 %v363
      %v725 = vpop.f32.mrb[0].mxu0
      %v726 = vadd.f32 0.0, %v725
      %v727 = vpop.f32.mrb[0].mxu0
      %v728 = vadd.f32 0.0, %v727
      %729 = vmatprep.mubr.f32.mxu0 %v480
      %730 = vmatmul.mubr.f32.gmra.mrb[0].mxu0 %v365
      %v731 = vpop.f32.mrb[0].mxu0
      %v732 = vadd.f32 0.0, %v731
      %v733 = vpop.f32.mrb[0].mxu0
      %v734 = vadd.f32 0.0, %v733
      %735 = vmatprep.mubr.f32.mxu0 %v483
      %736 = vmatmul.mubr.f32.gmra.mrb[0].mxu0 %v367
      %v737 = vpop.f32.mrb[0].mxu0
      %v738 = vadd.f32 0.0, %v737
      %v739 = vpop.f32.mrb[0].mxu0
      %v740 = vadd.f32 0.0, %v739
      %741 = vmatprep.mubr.f32.mxu0 %v486
      %742 = vmatmul.mubr.f32.gmra.mrb[0].mxu0 %v369
      %v743 = vpop.f32.mrb[0].mxu0
      %v744 = vadd.f32 0.0, %v743
      %v745 = vpop.f32.mrb[0].mxu0
      %v746 = vadd.f32 0.0, %v745
      %747 = vmatprep.mubr.f32.mxu0 %v489
      %748 = vmatmul.mubr.f32.gmra.mrb[0].mxu0 %v371
      %v749 = vpop.f32.mrb[0].mxu0
      %v750 = vadd.f32 0.0, %v749
      %v751 = vpop.f32.mrb[0].mxu0
      %v752 = vadd.f32 0.0, %v751
      %753 = vmatprep.mubr.f32.mxu0 %v492
      %754 = vmatmul.mubr.f32.gmra.mrb[0].mxu0 %v373
      %v755 = vpop.f32.mrb[0].mxu0
      %v756 = vadd.f32 0.0, %v755
      %v757 = vpop.f32.mrb[0].mxu0
      %v758 = vadd.f32 0.0, %v757
      %759 = vmatprep.mubr.f32.mxu0 %v495
      %760 = vmatmul.mubr.f32.gmra.mrb[0].mxu0 %v375
      %v761 = vpop.f32.mrb[0].mxu0
      %v762 = vadd.f32 0.0, %v761
      %v763 = vpop.f32.mrb[0].mxu0
      %v764 = vadd.f32 0.0, %v763
      %765 = vmatprep.mubr.f32.mxu0 %v498
      %766 = vmatmul.mubr.f32.gmra.mrb[0].mxu0 %v377
      %v767 = vpop.f32.mrb[0].mxu0
      %v768 = vadd.f32 0.0, %v767
      %v769 = vpop.f32.mrb[0].mxu0
      %v770 = vadd.f32 0.0, %v769
      %771 = vmatprep.mubr.f32.mxu0 %v501
      %772 = vmatmul.mubr.f32.gmra.mrb[0].mxu0 %v379
      %v773 = vpop.f32.mrb[0].mxu0
      %v774 = vadd.f32 0.0, %v773
      %v775 = vpop.f32.mrb[0].mxu0
      %v776 = vadd.f32 0.0, %v775
      %777 = vmatprep.mubr.f32.mxu0 %v504
      %778 = vmatmul.mubr.f32.gmra.mrb[0].mxu0 %v381
      %v779 = vpop.f32.mrb[0].mxu0
      %v780 = vadd.f32 0.0, %v779
      %v781 = vpop.f32.mrb[0].mxu0
      %v782 = vadd.f32 0.0, %v781
      %783 = vmatprep.mubr.f32.mxu0 %v507
      %784 = vmatmul.mubr.f32.gmra.mrb[0].mxu0 %v383
      %v785 = vpop.f32.mrb[0].mxu0
      %v786 = vadd.f32 0.0, %v785
      %v787 = vpop.f32.mrb[0].mxu0
      %v788 = vadd.f32 0.0, %v787
      %789 = vmatprep.mubr.f32.mxu0 %v510
      %790 = vmatmul.mubr.f32.gmra.mrb[0].mxu0 %v385
      %v791 = vpop.f32.mrb[0].mxu0
      %v792 = vadd.f32 0.0, %v791
      %v793 = vpop.f32.mrb[0].mxu0
      %v794 = vadd.f32 0.0, %v793
      %795 = vmatprep.mubr.f32.mxu0 %v513
      %796 = vmatmul.mubr.f32.gmra.mrb[0].mxu0 %v387
      %v797 = vpop.f32.mrb[0].mxu0
      %v798 = vadd.f32 0.0, %v797
      %v799 = vpop.f32.mrb[0].mxu0
      %v800 = vadd.f32 0.0, %v799
      %801 = vmatprep.mubr.f32.mxu0 %v516
      %802 = vmatmul.mubr.f32.gmra.mrb[0].mxu0 %v389
      %v803 = vpop.f32.mrb[0].mxu0
      %v804 = vadd.f32 0.0, %v803
      %v805 = vpop.f32.mrb[0].mxu0
      %v806 = vadd.f32 0.0, %v805
      %807 = vmatprep.mubr.f32.mxu0 %v519
      %808 = vmatmul.mubr.f32.gmra.mrb[0].mxu0 %v391
      %v809 = vpop.f32.mrb[0].mxu0
      %v810 = vadd.f32 0.0, %v809
      %v811 = vpop.f32.mrb[0].mxu0
      %v812 = vadd.f32 0.0, %v811
      %813 = vmatprep.mubr.f32.mxu0 %v522
      %814 = vmatmul.mubr.f32.gmra.mrb[0].mxu0 %v393
      %v815 = vpop.f32.mrb[0].mxu0
      %v816 = vadd.f32 0.0, %v815
      %v817 = vpop.f32.mrb[0].mxu0
      %v818 = vadd.f32 0.0, %v817
      %819 = vmatprep.mubr.f32.mxu0 %v525
      %820 = vmatmul.mubr.f32.gmra.mrb[0].mxu0 %v395
      %v821 = vpop.f32.mrb[0].mxu0
      %v822 = vadd.f32 0.0, %v821
      %v823 = vpop.f32.mrb[0].mxu0
      %v824 = vadd.f32 0.0, %v823
      %825 = vmatprep.mubr.f32.mxu0 %v528
      %826 = vmatmul.mubr.f32.gmra.mrb[0].mxu0 %v397
      %v827 = vpop.f32.mrb[0].mxu0
      %v828 = vadd.f32 0.0, %v827
      %v829 = vpop.f32.mrb[0].mxu0
      %v830 = vadd.f32 0.0, %v829
      %831 = vmatprep.mubr.f32.mxu0 %v531
      %832 = vmatmul.mubr.f32.gmra.mrb[0].mxu0 %v399
      %v833 = vpop.f32.mrb[0].mxu0
      %v834 = vadd.f32 0.0, %v833
      %v835 = vpop.f32.mrb[0].mxu0
      %v836 = vadd.f32 0.0, %v835
      %837 = vmatprep.mubr.f32.mxu0 %v534
      %838 = vmatmul.mubr.f32.gmra.mrb[0].mxu0 %v401
      %v839 = vpop.f32.mrb[0].mxu0
      %v840 = vadd.f32 0.0, %v839
      %v841 = vpop.f32.mrb[0].mxu0
      %v842 = vadd.f32 0.0, %v841
      %843 = vmatprep.mubr.f32.mxu0 %v537
      %844 = vmatmul.mubr.f32.gmra.mrb[0].mxu0 %v403
      %v845 = vpop.f32.mrb[0].mxu0
      %v846 = vadd.f32 0.0, %v845
      %v847 = vpop.f32.mrb[0].mxu0
      %v848 = vadd.f32 0.0, %v847
      %849 = vmatprep.mubr.f32.mxu0 %v540
      %850 = vmatmul.mubr.f32.gmra.mrb[0].mxu0 %v405
      %v851 = vpop.f32.mrb[0].mxu0
      %v852 = vadd.f32 0.0, %v851
      %v853 = vpop.f32.mrb[0].mxu0
      %v854 = vadd.f32 0.0, %v853
      %855 = vmatprep.mubr.f32.mxu0 %v543
      %856 = vmatmul.mubr.f32.gmra.mrb[0].mxu0 %v407
      %v857 = vpop.f32.mrb[0].mxu0
      %v858 = vadd.f32 0.0, %v857
      %v859 = vpop.f32.mrb[0].mxu0
      %v860 = vadd.f32 0.0, %v859
      %861 = vmatprep.mubr.f32.mxu0 %v546
      %862 = vmatmul.mubr.f32.gmra.mrb[0].mxu0 %v409
      %v863 = vpop.f32.mrb[0].mxu0
      %v864 = vadd.f32 0.0, %v863
      %v865 = vpop.f32.mrb[0].mxu0
      %v866 = vadd.f32 0.0, %v865
      %867 = vmatprep.mubr.f32.mxu0 %v549
      %868 = vmatmul.mubr.f32.gmra.mrb[0].mxu0 %v411
      %v869 = vpop.f32.mrb[0].mxu0
      %v870 = vadd.f32 0.0, %v869
      %v871 = vpop.f32.mrb[0].mxu0
      %v872 = vadd.f32 0.0, %v871
      %873 = vmatprep.mubr.f32.mxu0 %v552
      %874 = vmatmul.mubr.f32.gmra.mrb[0].mxu0 %v413
      %v875 = vpop.f32.mrb[0].mxu0
      %v876 = vadd.f32 0.0, %v875
      %v877 = vpop.f32.mrb[0].mxu0
      %v878 = vadd.f32 0.0, %v877
      %879 = vmatprep.mubr.f32.mxu0 %v555
      %880 = vmatmul.mubr.f32.gmra.mrb[0].mxu0 %v415
      %v881 = vpop.f32.mrb[0].mxu0
      %v882 = vadd.f32 0.0, %v881
      %v883 = vpop.f32.mrb[0].mxu0
      %v884 = vadd.f32 0.0, %v883
      %885 = vmatprep.mubr.f32.mxu0 %v558
      %886 = vmatmul.mubr.f32.gmra.mrb[0].mxu0 %v417
      %v887 = vpop.f32.mrb[0].mxu0
      %v888 = vadd.f32 0.0, %v887
      %v889 = vpop.f32.mrb[0].mxu0
      %v890 = vadd.f32 0.0, %v889
      %891 = vmatprep.mubr.f32.mxu0 %v561
      %892 = vmatmul.mubr.f32.gmra.mrb[0].mxu0 %v419
      %v893 = vpop.f32.mrb[0].mxu0
      %v894 = vadd.f32 0.0, %v893
      %v895 = vpop.f32.mrb[0].mxu0
      %v896 = vadd.f32 0.0, %v895
      %897 = vmatprep.mubr.f32.mxu0 %v564
      %898 = vmatmul.mubr.f32.gmra.mrb[0].mxu0 %v421
      %v899 = vpop.f32.mrb[0].mxu0
      %v900 = vadd.f32 0.0, %v899
      %v901 = vpop.f32.mrb[0].mxu0
      %v902 = vadd.f32 0.0, %v901
      %903 = vmatprep.mubr.f32.mxu0 %v567
      %904 = vmatmul.mubr.f32.gmra.mrb[0].mxu0 %v423
      %v905 = vpop.f32.mrb[0].mxu0
      %v906 = vadd.f32 0.0, %v905
      %v907 = vpop.f32.mrb[0].mxu0
      %v908 = vadd.f32 0.0, %v907
      %909 = vmatprep.mubr.f32.mxu0 %v570
      %910 = vmatmul.mubr.f32.gmra.mrb[0].mxu0 %v425
      %v911 = vpop.f32.mrb[0].mxu0
      %v912 = vadd.f32 0.0, %v911
      %v913 = vpop.f32.mrb[0].mxu0
      %v914 = vadd.f32 0.0, %v913
      %915 = vmatprep.mubr.f32.mxu0 %v573
      %916 = vmatmul.mubr.f32.gmra.mrb[0].mxu0 %v427
      %v917 = vpop.f32.mrb[0].mxu0
      %v918 = vadd.f32 0.0, %v917
      %v919 = vpop.f32.mrb[0].mxu0
      %v920 = vadd.f32 0.0, %v919
      %921 = vmatprep.mubr.f32.mxu0 %v576
      %922 = vmatmul.mubr.f32.gmra.mrb[0].mxu0 %v429
      %v923 = vpop.f32.mrb[0].mxu0
      %v924 = vadd.f32 0.0, %v923
      %v925 = vpop.f32.mrb[0].mxu0
      %v926 = vadd.f32 0.0, %v925
      %927 = vmatprep.mubr.f32.mxu0 %v579
      %928 = vmatmul.mubr.f32.gmra.mrb[0].mxu0 %v431
      %v929 = vpop.f32.mrb[0].mxu0
      %v930 = vadd.f32 0.0, %v929
      %v931 = vpop.f32.mrb[0].mxu0
      %v932 = vadd.f32 0.0, %v931
      %933 = vmatprep.mubr.f32.mxu0 %v582
      %934 = vmatmul.mubr.f32.gmra.mrb[0].mxu0 %v433
      %v935 = vpop.f32.mrb[0].mxu0
      %v936 = vadd.f32 0.0, %v935
      %v937 = vpop.f32.mrb[0].mxu0
      %v938 = vadd.f32 0.0, %v937
      %939 = vmatprep.mubr.f32.mxu0 %v585
      %940 = vmatmul.mubr.f32.gmra.mrb[0].mxu0 %v435
      %v941 = vpop.f32.mrb[0].mxu0
      %v942 = vadd.f32 0.0, %v941
      %v943 = vpop.f32.mrb[0].mxu0
      %v944 = vadd.f32 0.0, %v943
      %945 = vmatprep.mubr.f32.mxu0 %v588
      %946 = vmatmul.mubr.f32.gmra.mrb[0].mxu0 %v437
      %v947 = vpop.f32.mrb[0].mxu0
      %v948 = vadd.f32 0.0, %v947
      %v949 = vpop.f32.mrb[0].mxu0
      %v950 = vadd.f32 0.0, %v949
      %951 = vmatprep.mubr.f32.mxu0 %v591
      %952 = vmatmul.mubr.f32.gmra.mrb[0].mxu0 %v439
      %v953 = vpop.f32.mrb[0].mxu0
      %v954 = vadd.f32 0.0, %v953
      %v955 = vpop.f32.mrb[0].mxu0
      %v956 = vadd.f32 0.0, %v955
      %957 = vmatprep.mubr.f32.mxu0 %v594
      %958 = vmatmul.mubr.f32.gmra.mrb[0].mxu0 %v441
      %v959 = vpop.f32.mrb[0].mxu0
      %v960 = vadd.f32 0.0, %v959
      %v961 = vpop.f32.mrb[0].mxu0
      %v962 = vadd.f32 0.0, %v961
      %963 = vmatprep.mubr.f32.mxu0 %v597
      %964 = vmatmul.mubr.f32.gmra.mrb[0].mxu0 %v443
      %v965 = vpop.f32.mrb[0].mxu0
      %v966 = vadd.f32 0.0, %v965
      %v967 = vpop.f32.mrb[0].mxu0
      %v968 = vadd.f32 0.0, %v967
      %969 = vdwg.mxu0
      %970 = vst [vmem:[%s239] sm:$0xff] %v666
      %vm971 = vcmask 556032
      %972 = vst.msk [vmem:[%s239 + $0x8] sm:$0xff] %vm971, %v668
      %973 = vst [vmem:[%s239 + $0x10] sm:$0xff] %v672
      %974 = vst.msk [vmem:[%s239 + $0x18] sm:$0xff] %vm971, %v674
      %975 = vst [vmem:[%s239 + $0x20] sm:$0xff] %v678
      %976 = vst.msk [vmem:[%s239 + $0x28] sm:$0xff] %vm971, %v680
      %977 = vst [vmem:[%s239 + $0x30] sm:$0xff] %v684
      %978 = vst.msk [vmem:[%s239 + $0x38] sm:$0xff] %vm971, %v686
      %979 = vst [vmem:[%s239 + $0x40] sm:$0xff] %v690
      %980 = vst.msk [vmem:[%s239 + $0x48] sm:$0xff] %vm971, %v692
      %981 = vst [vmem:[%s239 + $0x50] sm:$0xff] %v696
      %982 = vst.msk [vmem:[%s239 + $0x58] sm:$0xff] %vm971, %v698
      %983 = vst [vmem:[%s239 + $0x60] sm:$0xff] %v702
      %984 = vst.msk [vmem:[%s239 + $0x68] sm:$0xff] %vm971, %v704
      %985 = vst [vmem:[%s239 + $0x70] sm:$0xff] %v708
      %986 = vst.msk [vmem:[%s239 + $0x78] sm:$0xff] %vm971, %v710
      %987 = vst [vmem:[%s239 + $0x80] sm:$0xff] %v714
      %988 = vst.msk [vmem:[%s239 + $0x88] sm:$0xff] %vm971, %v716
      %989 = vst [vmem:[%s239 + $0x90] sm:$0xff] %v720
      %990 = vst.msk [vmem:[%s239 + $0x98] sm:$0xff] %vm971, %v722
      %991 = vst [vmem:[%s239 + $0xa0] sm:$0xff] %v726
      %992 = vst.msk [vmem:[%s239 + $0xa8] sm:$0xff] %vm971, %v728
      %993 = vst [vmem:[%s239 + $0xb0] sm:$0xff] %v732
      %994 = vst.msk [vmem:[%s239 + $0xb8] sm:$0xff] %vm971, %v734
      %995 = vst [vmem:[%s239 + $0xc0] sm:$0xff] %v738
      %996 = vst.msk [vmem:[%s239 + $0xc8] sm:$0xff] %vm971, %v740
      %997 = vst [vmem:[%s239 + $0xd0] sm:$0xff] %v744
      %998 = vst.msk [vmem:[%s239 + $0xd8] sm:$0xff] %vm971, %v746
      %999 = vst [vmem:[%s239 + $0xe0] sm:$0xff] %v750
      %1000 = vst.msk [vmem:[%s239 + $0xe8] sm:$0xff] %vm971, %v752
      %1001 = vst [vmem:[%s239 + $0xf0] sm:$0xff] %v756
      %1002 = vst.msk [vmem:[%s239 + $0xf8] sm:$0xff] %vm971, %v758
      %1003 = vst [vmem:[%s239 + $0x100] sm:$0xff] %v762
      %1004 = vst.msk [vmem:[%s239 + $0x108] sm:$0xff] %vm971, %v764
      %1005 = vst [vmem:[%s239 + $0x110] sm:$0xff] %v768
      %1006 = vst.msk [vmem:[%s239 + $0x118] sm:$0xff] %vm971, %v770
      %1007 = vst [vmem:[%s239 + $0x120] sm:$0xff] %v774
      %1008 = vst.msk [vmem:[%s239 + $0x128] sm:$0xff] %vm971, %v776
      %1009 = vst [vmem:[%s239 + $0x130] sm:$0xff] %v780
      %1010 = vst.msk [vmem:[%s239 + $0x138] sm:$0xff] %vm971, %v782
      %1011 = vst [vmem:[%s239 + $0x140] sm:$0xff] %v786
      %1012 = vst.msk [vmem:[%s239 + $0x148] sm:$0xff] %vm971, %v788
      %1013 = vst [vmem:[%s239 + $0x150] sm:$0xff] %v792
      %1014 = vst.msk [vmem:[%s239 + $0x158] sm:$0xff] %vm971, %v794
      %1015 = vst [vmem:[%s239 + $0x160] sm:$0xff] %v798
      %1016 = vst.msk [vmem:[%s239 + $0x168] sm:$0xff] %vm971, %v800
      %1017 = vst [vmem:[%s239 + $0x170] sm:$0xff] %v804
      %1018 = vst.msk [vmem:[%s239 + $0x178] sm:$0xff] %vm971, %v806
      %1019 = vst [vmem:[%s239 + $0x180] sm:$0xff] %v810
      %1020 = vst.msk [vmem:[%s239 + $0x188] sm:$0xff] %vm971, %v812
      %1021 = vst [vmem:[%s239 + $0x190] sm:$0xff] %v816
      %1022 = vst.msk [vmem:[%s239 + $0x198] sm:$0xff] %vm971, %v818
      %1023 = vst [vmem:[%s239 + $0x1a0] sm:$0xff] %v822
      %1024 = vst.msk [vmem:[%s239 + $0x1a8] sm:$0xff] %vm971, %v824
      %1025 = vst [vmem:[%s239 + $0x1b0] sm:$0xff] %v828
      %1026 = vst.msk [vmem:[%s239 + $0x1b8] sm:$0xff] %vm971, %v830
      %1027 = vst [vmem:[%s239 + $0x1c0] sm:$0xff] %v834
      %1028 = vst.msk [vmem:[%s239 + $0x1c8] sm:$0xff] %vm971, %v836
      %1029 = vst [vmem:[%s239 + $0x1d0] sm:$0xff] %v840
      %1030 = vst.msk [vmem:[%s239 + $0x1d8] sm:$0xff] %vm971, %v842
      %1031 = vst [vmem:[%s239 + $0x1e0] sm:$0xff] %v846
      %1032 = vst.msk [vmem:[%s239 + $0x1e8] sm:$0xff] %vm971, %v848
      %1033 = vst [vmem:[%s239 + $0x1f0] sm:$0xff] %v852
      %1034 = vst.msk [vmem:[%s239 + $0x1f8] sm:$0xff] %vm971, %v854
      %1035 = vst [vmem:[%s239 + $0x200] sm:$0xff] %v858
      %1036 = vst.msk [vmem:[%s239 + $0x208] sm:$0xff] %vm971, %v860
      %1037 = vst [vmem:[%s239 + $0x210] sm:$0xff] %v864
      %1038 = vst.msk [vmem:[%s239 + $0x218] sm:$0xff] %vm971, %v866
      %1039 = vst [vmem:[%s239 + $0x220] sm:$0xff] %v870
      %1040 = vst.msk [vmem:[%s239 + $0x228] sm:$0xff] %vm971, %v872
      %1041 = vst [vmem:[%s239 + $0x230] sm:$0xff] %v876
      %1042 = vst.msk [vmem:[%s239 + $0x238] sm:$0xff] %vm971, %v878
      %1043 = vst [vmem:[%s239 + $0x240] sm:$0xff] %v882
      %1044 = vst.msk [vmem:[%s239 + $0x248] sm:$0xff] %vm971, %v884
      %1045 = vst [vmem:[%s239 + $0x250] sm:$0xff] %v888
      %1046 = vst.msk [vmem:[%s239 + $0x258] sm:$0xff] %vm971, %v890
      %1047 = vst [vmem:[%s239 + $0x260] sm:$0xff] %v894
      %1048 = vst.msk [vmem:[%s239 + $0x268] sm:$0xff] %vm971, %v896
      %1049 = vst [vmem:[%s239 + $0x270] sm:$0xff] %v900
      %1050 = vst.msk [vmem:[%s239 + $0x278] sm:$0xff] %vm971, %v902
      %1051 = vst [vmem:[%s239 + $0x280] sm:$0xff] %v906
      %1052 = vst.msk [vmem:[%s239 + $0x288] sm:$0xff] %vm971, %v908
      %1053 = vst [vmem:[%s239 + $0x290] sm:$0xff] %v912
      %1054 = vst.msk [vmem:[%s239 + $0x298] sm:$0xff] %vm971, %v914
      %1055 = vst [vmem:[%s239 + $0x2a0] sm:$0xff] %v918
      %1056 = vst.msk [vmem:[%s239 + $0x2a8] sm:$0xff] %vm971, %v920
      %1057 = vst [vmem:[%s239 + $0x2b0] sm:$0xff] %v924
      %1058 = vst.msk [vmem:[%s239 + $0x2b8] sm:$0xff] %vm971, %v926
      %1059 = vst [vmem:[%s239 + $0x2c0] sm:$0xff] %v930
      %1060 = vst.msk [vmem:[%s239 + $0x2c8] sm:$0xff] %vm971, %v932
      %1061 = vst [vmem:[%s239 + $0x2d0] sm:$0xff] %v936
      %1062 = vst.msk [vmem:[%s239 + $0x2d8] sm:$0xff] %vm971, %v938
      %1063 = vst [vmem:[%s239 + $0x2e0] sm:$0xff] %v942
      %1064 = vst.msk [vmem:[%s239 + $0x2e8] sm:$0xff] %vm971, %v944
      %1065 = vst [vmem:[%s239 + $0x2f0] sm:$0xff] %v948
      %1066 = vst.msk [vmem:[%s239 + $0x2f8] sm:$0xff] %vm971, %v950
      %1067 = vst [vmem:[%s239 + $0x300] sm:$0xff] %v954
      %1068 = vst.msk [vmem:[%s239 + $0x308] sm:$0xff] %vm971, %v956
      %1069 = vst [vmem:[%s239 + $0x310] sm:$0xff] %v960
      %1070 = vst.msk [vmem:[%s239 + $0x318] sm:$0xff] %vm971, %v962
      %1071 = vst [vmem:[%s239 + $0x320] sm:$0xff] %v966
      %1072 = vst.msk [vmem:[%s239 + $0x328] sm:$0xff] %vm971, %v968
      %s1073 = smul.u32 51, %s19
      %p1074 = scmp.lt.s32.totalorder %s18, 0
      %s1075 = scalar_select %p1074, %s18, 0
      %p1076 = scmp.lt.s32.totalorder %s1073, 101
      %s1077 = scalar_select %p1076, %s1073, 101
      %s1078 = smul.addr %s1077, 2
      %s1079 = smul.addr %s1075, 204
      %s1080 = sadd.s32 %s1078, %s1079
      %s1081 = smul.addr %s1080, 8
      %s1082 = scalar_lea.vmem %s3, %s1081
      // Predicated region
      $region33: #{tpu_custom_call.1} parent=31 // pred_check
        %p1083 = pneg %p124
      $region34: #{tpu_custom_call.1} parent=31 // pred_check_branch
        %1085 = sbr.rel (%p1083) target = $region36
      $region35: #{tpu_custom_call.1} parent=31 // pred_region
        %s1086 = smul.u32 51, %s19
      $region36: #{tpu_custom_call.1} parent=31 // pred_fallthru
        _
    $region32: #{tpu_custom_call.1} parent=5 // pred_fallthru
      _
    %p1087 = scmp.le.s32.totalorder 2, %s9
    // Predicated region
    $region37: #{tpu_custom_call.1} parent=5 // pred_check
      %p1088 = pneg %p1087
    $region38: #{tpu_custom_call.1} parent=5 // pred_check_branch
      %1090 = sbr.rel (%p1088) target = $region40
    $region39: #{tpu_custom_call.1} parent=5 // pred_region
      %s1091 = ssub.s32 %s9, 2
      // Predicated region
      $region41: #{tpu_custom_call.1} parent=39 // pred_check
        %p1092 = pneg %p130
      $region42: #{tpu_custom_call.1} parent=39 // pred_check_branch
        %1094 = sbr.rel (%p1092) target = $region44
      $region43: #{tpu_custom_call.1} parent=39 // pred_region
        %s1095 = smul.u32 51, %s21
        %p1096 = scmp.lt.s32.totalorder %s20, 0
        %s1097 = scalar_select %p1096, %s20, 0
        %p1098 = scmp.lt.s32.totalorder %s1095, 101
        %s1099 = scalar_select %p1098, %s1095, 101
        %s1100 = smul.addr %s1099, 2
        %s1101 = smul.addr %s1097, 204
        %s1102 = sadd.s32 %s1100, %s1101
        %s1103 = smul.addr %s1102, 8
        %s1104 = scalar_lea.vmem %s3, %s1103
      $region44: #{tpu_custom_call.1} parent=39 // pred_fallthru
        _
    $region40: #{tpu_custom_call.1} parent=5 // pred_fallthru
      _
  $region6: #{tpu_custom_call.1} parent=0 // loop_footer
    %s13 = sadd.s32 1, %s9
  $region7: #{tpu_custom_call.1} parent=0 // loop_footer_branch
    %8 = sbr.rel target = $region3
  $region8: #{tpu_custom_call.1} parent=0 // loop_exit
    _

</llo_original>
